<compile_context>
chip_gen: v7x
topology: tpu7x:2x2x1
jax: 0.10.0
libtpu: 0.0.40
codegen_flags: <defaults>
</compile_context>

<pallas_src>
import jax
import jax.numpy as jnp
from jax.experimental import pallas as pl
from jax.experimental.pallas import tpu as pltpu


def _patch_embed_kernel(lhs_ref, w_ref, posb_ref, out_ref):
    # lhs_ref:  (tm, K)   bf16  im2col rows (sequence row 0 is zeros -> cls slot)
    # w_ref:    (K, emb)  bf16  flattened conv weight, (c, kh, kw) ordering
    # posb_ref: (tm, emb) f32   positions with cls-token / conv-bias folded in
    # out_ref:  (tm, emb) f32
    acc = jnp.dot(lhs_ref[...], w_ref[...], preferred_element_type=jnp.float32)
    out_ref[...] = (acc + posb_ref[...]).astype(out_ref.dtype)


def patch_embedding_forward(x, conv_w, conv_b, cls_token, positions, patch_size):
    """x: (b, c, H, W) NCHW float32.  Returns (b, n_patches + 1, emb) float32."""
    b, c, H, W = x.shape
    p = patch_size
    h, w = H // p, W // p
    n_patches = h * w
    S = n_patches + 1                       # cls + patches
    emb = conv_w.shape[0]
    K = c * p * p

    # ---------------- host-side prep (one pass over x; rest is tiny) --------
    # im2col: (b,c,h,p,w,p) -> (b,h,w,c,p,p) -> (b, n_patches, K), K minor,
    # lane-dense, ordering matches conv_w.reshape(emb, K).
    patches = x.reshape(b, c, h, p, w, p).transpose(0, 2, 4, 1, 3, 5)
    patches = patches.reshape(b, n_patches, K).astype(jnp.bfloat16)
    # Prepend a zero row per image for the cls slot so the kernel writes the
    # final [cls, patch_0, ...] sequence directly (no post-kernel concat).
    lhs = jnp.pad(patches, ((0, 0), (1, 0), (0, 0)))                  # (b, S, K)

    # Flattened conv weight (K, emb), bf16 for the MXU.
    w_flat = conv_w.reshape(emb, K).T.astype(jnp.bfloat16)            # (K, emb)

    # Positions with per-row bias folded in:
    #   row 0      -> positions[0] + cls_token   (zero LHS row => cls output)
    #   rows 1..S  -> positions[i] + conv bias
    bias_rows = jnp.concatenate(
        [cls_token.reshape(1, emb),
         jnp.broadcast_to(conv_b[None, :], (n_patches, emb))], axis=0)
    posb = (positions + bias_rows).astype(jnp.float32)                # (S, emb)

    # ---------------- tiling -------------------------------------------------
    TM_TARGET = 256                 # multiple of 128; fills MXU on v5e/v6e/v7x
    tm = S if S <= TM_TARGET else TM_TARGET
    num_tiles = pl.cdiv(S, tm)

    grid_spec = pltpu.PrefetchScalarGridSpec(
        num_scalar_prefetch=0,
        grid=(b, num_tiles),
        in_specs=[
            # im2col LHS tile for this (batch, sequence-tile) step.
            pl.BlockSpec((pl.Squeezed(), tm, K), lambda bi, ti: (bi, ti, 0)),
            # Weight: constant index_map -> fetched once, resident across grid.
            pl.BlockSpec((K, emb), lambda bi, ti: (0, 0)),
            # Positions(+bias) rows for this sequence tile.
            pl.BlockSpec((tm, emb), lambda bi, ti: (ti, 0)),
        ],
        out_specs=pl.BlockSpec((pl.Squeezed(), tm, emb),
                               lambda bi, ti: (bi, ti, 0)),
    )

    flops = 2 * b * S * K * emb
    bytes_accessed = (lhs.size * 2            # bf16 im2col LHS
                      + w_flat.size * 2       # bf16 weight
                      + posb.size * 4         # f32 positions(+bias)
                      + b * S * emb * 4)      # f32 output

    out = pl.pallas_call(
        _patch_embed_kernel,
        out_shape=jax.ShapeDtypeStruct((b, S, emb), jnp.float32),
        grid_spec=grid_spec,
        compiler_params=pltpu.CompilerParams(
            dimension_semantics=("parallel", "parallel"),
            vmem_limit_bytes=48 * 1024 * 1024,   # fits v7x's 64 MiB VMEM/TC
        ),
        cost_estimate=pl.CostEstimate(flops=flops, transcendentals=0,
                                      bytes_accessed=bytes_accessed),
    )(lhs, w_flat, posb)
    return out


if __name__ == "__main__":
    # Small, module-consistent shapes.
    in_channels = 4
    patch_size = 4
    emb_size = 32
    img_size = 16
    batch = 2
    hh = ww = img_size // patch_size
    n_patches = hh * ww                          # 16
    K = in_channels * patch_size * patch_size    # 64

    key = jax.random.PRNGKey(0)
    k_x, k_w, k_b, k_cls, k_pos = jax.random.split(key, 5)

    x = jax.random.normal(k_x, (batch, in_channels, img_size, img_size), jnp.float32)
    conv_w = jax.random.normal(
        k_w, (emb_size, in_channels, patch_size, patch_size), jnp.float32) * 0.02
    conv_b = jax.random.normal(k_b, (emb_size,), jnp.float32) * 0.02
    cls_token = jax.random.normal(k_cls, (1, 1, emb_size), jnp.float32)
    positions = jax.random.normal(k_pos, (n_patches + 1, emb_size), jnp.float32)

    out = patch_embedding_forward(
        x, conv_w, conv_b, cls_token, positions, patch_size)
    out = jax.block_until_ready(out)

    # Reference matched to the kernel's numerics (bf16 MXU operands, f32 accum).
    xr = x.astype(jnp.bfloat16).astype(jnp.float32)
    wr = conv_w.astype(jnp.bfloat16).astype(jnp.float32)
    patches_ref = xr.reshape(batch, in_channels, hh, patch_size, ww, patch_size)
    patches_ref = patches_ref.transpose(0, 2, 4, 1, 3, 5).reshape(batch, n_patches, K)
    proj = jnp.dot(patches_ref, wr.reshape(emb_size, K).T,
                   precision=jax.lax.Precision.HIGHEST) + conv_b[None, None, :]
    ref_cls = jnp.broadcast_to(cls_token, (batch, 1, emb_size))
    ref = jnp.concatenate([ref_cls, proj], axis=1) + positions[None]

    assert out.shape == (batch, n_patches + 1, emb_size)
    assert jnp.allclose(out, ref, atol=2e-3, rtol=2e-3)
    print("KERNEL_OK")
</pallas_src>

<mosaic_0001>
module attributes {stable_mosaic.version = 11 : i64} {
  func.func @_patch_embed_kernel(%arg0: i32, %arg1: i32, %arg2: memref<1x17x64xbf16, #tpu.memory_space<vmem>>, %arg3: memref<64x32xbf16, #tpu.memory_space<vmem>>, %arg4: memref<17x32xf32, #tpu.memory_space<vmem>>, %arg5: memref<1x17x32xf32, #tpu.memory_space<vmem>>) attributes {dimension_semantics = [#tpu.dimension_semantics<parallel>, #tpu.dimension_semantics<parallel>], iteration_bounds = array<i64: 2, 1>, scalar_prefetch = 0 : i64, scratch_operands = 0 : i64, tpu.core_type = #tpu.core_type<tc>, window_params = [{transform_indices = @transform_0, window_bounds = array<i64: 1, 17, 64>}, {pipeline_mode = #tpu.pipeline_mode<synchronous>, transform_indices = @transform_1, window_bounds = array<i64: 64, 32>}, {transform_indices = @transform_2, window_bounds = array<i64: 17, 32>}, {transform_indices = @transform_3, window_bounds = array<i64: 1, 17, 32>}]} {
    %c0 = arith.constant 0 : index
    %c0_0 = arith.constant 0 : index
    %c0_1 = arith.constant 0 : index
    %0 = vector.load %arg2[%c0, %c0_0, %c0_1] : memref<1x17x64xbf16, #tpu.memory_space<vmem>>, vector<1x17x64xbf16>
    %1 = vector.shape_cast %0 : vector<1x17x64xbf16> to vector<17x64xbf16>
    %c0_2 = arith.constant 0 : index
    %c0_3 = arith.constant 0 : index
    %2 = vector.load %arg3[%c0_2, %c0_3] : memref<64x32xbf16, #tpu.memory_space<vmem>>, vector<64x32xbf16>
    %cst = arith.constant dense<0.000000e+00> : vector<17x32xf32>
    %3 = tpu.matmul %1, %2, %cst {dimension_numbers = #tpu.dot_dimension_numbers<[1], [0], [0], [1], [0, 0, 1, 1], [], []>} : vector<17x64xbf16>, vector<64x32xbf16>, vector<17x32xf32> -> vector<17x32xf32>
    %c0_4 = arith.constant 0 : index
    %c0_5 = arith.constant 0 : index
    %4 = vector.load %arg4[%c0_4, %c0_5] : memref<17x32xf32, #tpu.memory_space<vmem>>, vector<17x32xf32>
    %5 = arith.addf %3, %4 : vector<17x32xf32>
    %c0_6 = arith.constant 0 : index
    %c0_7 = arith.constant 0 : index
    %c0_8 = arith.constant 0 : index
    %6 = vector.load %arg5[%c0_6, %c0_7, %c0_8] : memref<1x17x32xf32, #tpu.memory_space<vmem>>, vector<1x17x32xf32>
    %7 = vector.shape_cast %6 : vector<1x17x32xf32> to vector<17x32xf32>
    %8 = vector.shape_cast %5 : vector<17x32xf32> to vector<1x17x32xf32>
    tpu.vector_store %arg5[%c0_6, %c0_7, %c0_8], %8 {strides = array<i32>} : memref<1x17x32xf32, #tpu.memory_space<vmem>>, vector<1x17x32xf32>,
    return
  }
  func.func @transform_0(%arg0: i32, %arg1: i32) -> (i32, i32, i32) {
    %c0_i32 = arith.constant 0 : i32
    %c0_i32_0 = arith.constant 0 : i32
    return %arg0, %arg1, %c0_i32 : i32, i32, i32
  }
  func.func @transform_1(%arg0: i32, %arg1: i32) -> (i32, i32) {
    %c0_i32 = arith.constant 0 : i32
    %c0_i32_0 = arith.constant 0 : i32
    %c0_i32_1 = arith.constant 0 : i32
    return %c0_i32, %c0_i32_0 : i32, i32
  }
  func.func @transform_2(%arg0: i32, %arg1: i32) -> (i32, i32) {
    %c0_i32 = arith.constant 0 : i32
    %c0_i32_0 = arith.constant 0 : i32
    return %arg1, %c0_i32 : i32, i32
  }
  func.func @transform_3(%arg0: i32, %arg1: i32) -> (i32, i32, i32) {
    %c0_i32 = arith.constant 0 : i32
    %c0_i32_0 = arith.constant 0 : i32
    return %arg0, %arg1, %c0_i32 : i32, i32, i32
  }
}

</mosaic_0001>

<llo_original>
// kernel: tpu_custom_call.1
$region0: #{tpu_custom_call.1}
  #allocation0 [shape = 'u32[]', space=smem, size = 0x4, offset = 0x4, fixed_abs, tag = 'smem constant byte address 0x4 - core index']
  #allocation1 [shape = 'u32[144,128]{1,0:T(1,128)}', space=vmem, size = 0x12000, scoped, tag = 'internal scratch']
  %s0 = inlined_call_operand.vmem [shape: bf16[2,17,64], index: 0, kind: input, shape index: {}]
  %s1 = inlined_call_operand.vmem [shape: bf16[64,32], index: 1, kind: input, shape index: {}]
  %s2 = inlined_call_operand.vmem [shape: f32[17,32], index: 2, kind: input, shape index: {}]
  %s3 = inlined_call_operand.vmem [shape: f32[2,17,32], index: 3, kind: output, shape index: {}]
  %s4 = sld [smem:[#allocation0]]
  $region45: #{tpu_custom_call.1} parent=0
    _
  %s6 = ssub.s32 1, %s4
  %s7 = scalar_select 0, %s6, %s4
  loop: start=0, step=1, limit=4
  $region2: #{tpu_custom_call.1} parent=0 // loop_pre_header
    _
  $region3: #{tpu_custom_call.1} parent=0 // loop_header
    %s9 = sphi 0, %s13
    %p10 = scmp.ge.s32.totalorder %s9, 4
    %s16 = sphi 0, %s28
    %s17 = sphi 0, %s24
    %s18 = sphi 0, %s16
    %s19 = sphi 0, %s17
    %s20 = sphi 0, %s18
    %s21 = sphi 0, %s19
    %s33 = sphi 0, %s35
    %s36 = sphi 0, %s33
    %s37 = sphi 0, %s36
    %s53 = sphi 0, %s37
    %s57 = sphi 0, %s57
    %s59 = sphi 0, %s57
    %s60 = sphi 0, %s59
    %s74 = sphi 0, %s60
    %s80 = sphi 0, %s82
    %s83 = sphi 0, %s80
    %s84 = sphi 0, %s83
    %s100 = sphi 0, %s84
    %s108 = sphi 0, %s110
    %s111 = sphi 0, %s108
    %s112 = sphi 0, %s111
    %s128 = sphi 0, %s112
  $region4: #{tpu_custom_call.1} parent=0 // loop_header_branch
    %12 = sbr.rel (%p10) target = $region8
  $region5: #{tpu_custom_call.1} parent=0 // loop_body
    %s14 = ssub.s32 %s9, 1
    %s15 = ssub.s32 %s9, 2
    %s22 = sadd.s32 1, %s17
    %p23 = scmp.ge.s32.totalorder %s22, 1
    %s24 = scalar_select %p23, 0, %s22
    %s25 = sadd.s32 1, %s16
    %s26 = scalar_select %p23, %s25, %s16
    %p27 = scmp.ge.s32.totalorder %s26, 2
    %s28 = scalar_select %p27, 0, %s26
    %s29 = ssub.s32 %s16, %s28
    %s30 = ssub.s32 %s17, %s24
    %s31 = sor.u32 %s29, %s30
    %p32 = scmp.eq.s32.totalorder %s31, 0
    %s34 = sadd.s32 %s33, 1
    %s35 = scalar_select %p32, %s33, %s34
    %p38 = pneg %p32
    %p39 = scmp.eq.s32.totalorder %s9, 1
    %p40 = por %p38, %p39
    %p41 = scmp.ne.s32.totalorder %s33, %s36
    %p42 = scmp.eq.s32.totalorder %s9, 0
    %p43 = por %p41, %p42
    %p44 = scmp.ne.s32.totalorder %s33, %s36
    %p45 = scmp.eq.s32.totalorder %s14, 1
    %p46 = por %p44, %p45
    %p47 = scmp.ne.s32.totalorder %s36, %s37
    %p48 = scmp.eq.s32.totalorder %s14, 0
    %p49 = por %p47, %p48
    %p50 = scmp.ne.s32.totalorder %s36, %s37
    %p51 = scmp.eq.s32.totalorder %s15, 1
    %p52 = por %p50, %p51
    %p54 = scmp.ne.s32.totalorder %s37, %s53
    %p55 = scmp.eq.s32.totalorder %s15, 0
    %p56 = por %p54, %p55
    %s58 = sadd.s32 %s57, 1
    %p61 = scmp.eq.s32.totalorder %s9, 1
    %p62 = scmp.ne.s32.totalorder %s57, %s59
    %p63 = scmp.eq.s32.totalorder %s9, 0
    %p64 = por %p62, %p63
    %p65 = scmp.ne.s32.totalorder %s57, %s59
    %p66 = scmp.eq.s32.totalorder %s14, 1
    %p67 = por %p65, %p66
    %p68 = scmp.ne.s32.totalorder %s59, %s60
    %p69 = scmp.eq.s32.totalorder %s14, 0
    %p70 = por %p68, %p69
    %p71 = scmp.ne.s32.totalorder %s59, %s60
    %p72 = scmp.eq.s32.totalorder %s15, 1
    %p73 = por %p71, %p72
    %p75 = scmp.ne.s32.totalorder %s60, %s74
    %p76 = scmp.eq.s32.totalorder %s15, 0
    %p77 = por %p75, %p76
    %s78 = ssub.s32 %s17, %s24
    %p79 = scmp.eq.s32.totalorder %s78, 0
    %s81 = sadd.s32 %s80, 1
    %s82 = scalar_select %p79, %s80, %s81
    %p85 = pneg %p79
    %p86 = scmp.eq.s32.totalorder %s9, 1
    %p87 = por %p85, %p86
    %p88 = scmp.ne.s32.totalorder %s80, %s83
    %p89 = scmp.eq.s32.totalorder %s9, 0
    %p90 = por %p88, %p89
    %p91 = scmp.ne.s32.totalorder %s80, %s83
    %p92 = scmp.eq.s32.totalorder %s14, 1
    %p93 = por %p91, %p92
    %p94 = scmp.ne.s32.totalorder %s83, %s84
    %p95 = scmp.eq.s32.totalorder %s14, 0
    %p96 = por %p94, %p95
    %p97 = scmp.ne.s32.totalorder %s83, %s84
    %p98 = scmp.eq.s32.totalorder %s15, 1
    %p99 = por %p97, %p98
    %p101 = scmp.ne.s32.totalorder %s84, %s100
    %p102 = scmp.eq.s32.totalorder %s15, 0
    %p103 = por %p101, %p102
    %s104 = ssub.s32 %s16, %s28
    %s105 = ssub.s32 %s17, %s24
    %s106 = sor.u32 %s104, %s105
    %p107 = scmp.eq.s32.totalorder %s106, 0
    %s109 = sadd.s32 %s108, 1
    %s110 = scalar_select %p107, %s108, %s109
    %p113 = pneg %p107
    %p114 = scmp.eq.s32.totalorder %s9, 1
    %p115 = por %p113, %p114
    %p116 = scmp.ne.s32.totalorder %s108, %s111
    %p117 = scmp.eq.s32.totalorder %s9, 0
    %p118 = por %p116, %p117
    %p119 = scmp.ne.s32.totalorder %s108, %s111
    %p120 = scmp.eq.s32.totalorder %s14, 1
    %p121 = por %p119, %p120
    %p122 = scmp.ne.s32.totalorder %s111, %s112
    %p123 = scmp.eq.s32.totalorder %s14, 0
    %p124 = por %p122, %p123
    %p125 = scmp.ne.s32.totalorder %s111, %s112
    %p126 = scmp.eq.s32.totalorder %s15, 1
    %p127 = por %p125, %p126
    %p129 = scmp.ne.s32.totalorder %s112, %s128
    %p130 = scmp.eq.s32.totalorder %s15, 0
    %p131 = por %p129, %p130
    %p132 = scmp.le.s32.totalorder 1, %s9
    %p133 = scmp.lt.s32.totalorder %s9, 3
    %p134 = pnand %p132, %p133
    %p135 = pneg %p134
    // Predicated region
    $region9: #{tpu_custom_call.1} parent=5 // pred_check
      _
    $region10: #{tpu_custom_call.1} parent=5 // pred_check_branch
      %137 = sbr.rel (%p134) target = $region12
    $region11: #{tpu_custom_call.1} parent=5 // pred_region
      %s138 = ssub.s32 %s9, 1
      // Predicated region
      $region13: #{tpu_custom_call.1} parent=11 // pred_check
        %p139 = pneg %p70
      $region14: #{tpu_custom_call.1} parent=11 // pred_check_branch
        %141 = sbr.rel (%p139) target = $region16
      $region15: #{tpu_custom_call.1} parent=11 // pred_region
        _
      $region16: #{tpu_custom_call.1} parent=11 // pred_fallthru
        _
      // Predicated region
      $region17: #{tpu_custom_call.1} parent=11 // pred_check
        %p142 = pneg %p96
      $region18: #{tpu_custom_call.1} parent=11 // pred_check_branch
        %144 = sbr.rel (%p142) target = $region20
      $region19: #{tpu_custom_call.1} parent=11 // pred_region
        %s145 = smul.u32 3, %s19
        %p146 = scmp.lt.s32.totalorder %s145, 2
        %s147 = scalar_select %p146, %s145, 2
        %s148 = smul.addr %s147, 8
        %s149 = scalar_lea.vmem %s2, %s148
        %s150 = smul.u32 3, %s19
      $region20: #{tpu_custom_call.1} parent=11 // pred_fallthru
        _
    $region12: #{tpu_custom_call.1} parent=5 // pred_fallthru
      _
    %p151 = scmp.lt.s32.totalorder %s9, 2
    // Predicated region
    $region21: #{tpu_custom_call.1} parent=5 // pred_check
      %p152 = pneg %p151
    $region22: #{tpu_custom_call.1} parent=5 // pred_check_branch
      %154 = sbr.rel (%p152) target = $region24
    $region23: #{tpu_custom_call.1} parent=5 // pred_region
      // Predicated region
      $region25: #{tpu_custom_call.1} parent=23 // pred_check
        %p155 = pneg %p43
      $region26: #{tpu_custom_call.1} parent=23 // pred_check_branch
        %157 = sbr.rel (%p155) target = $region28
      $region27: #{tpu_custom_call.1} parent=23 // pred_region
        %s158 = smul.u32 3, %s17
        %p159 = scmp.lt.s32.totalorder %s16, 1
        %s160 = scalar_select %p159, %s16, 1
        %p161 = scmp.lt.s32.totalorder %s158, 2
        %s162 = scalar_select %p161, %s158, 2
        %s163 = smul.addr %s160, 3
        %s164 = sadd.s32 %s162, %s163
        %s165 = smul.addr %s164, 4
        %s166 = scalar_lea.vmem %s0, %s165
        %s167 = smul.u32 3, %s17
      $region28: #{tpu_custom_call.1} parent=23 // pred_fallthru
        _
    $region24: #{tpu_custom_call.1} parent=5 // pred_fallthru
      _
    %p168 = scmp.le.s32.totalorder 1, %s9
    %p169 = scmp.lt.s32.totalorder %s9, 3
    %p170 = pnand %p168, %p169
    %p171 = pneg %p170
    // Predicated region
    $region29: #{tpu_custom_call.1} parent=5 // pred_check
      _
    $region30: #{tpu_custom_call.1} parent=5 // pred_check_branch
      %173 = sbr.rel (%p170) target = $region32
    $region31: #{tpu_custom_call.1} parent=5 // pred_region
      %s174 = ssub.s32 %s9, 1
      %s175 = smul.u32 3, %s19
      %p176 = scmp.lt.s32.totalorder %s18, 1
      %s177 = scalar_select %p176, %s18, 1
      %p178 = scmp.lt.s32.totalorder %s175, 2
      %s179 = scalar_select %p178, %s175, 2
      %s180 = smul.addr %s177, 3
      %s181 = sadd.s32 %s179, %s180
      %s182 = smul.addr %s181, 4
      %s183 = scalar_lea.vmem %s0, %s182
      %p184 = pneg %p49
      %p185 = pneg %p46
      %p186 = pneg %p70
      %p187 = pneg %p67
      %s188 = smul.u32 3, %s19
      %p189 = scmp.lt.s32.totalorder %s188, 2
      %s190 = scalar_select %p189, %s188, 2
      %s191 = smul.addr %s190, 8
      %s192 = scalar_lea.vmem %s2, %s191
      %p193 = pneg %p96
      %p194 = pneg %p93
      %p195 = pneg %p124
      %p196 = pneg %p121
      %s197 = smul.u32 3, %s19
      %p198 = scmp.lt.s32.totalorder %s18, 1
      %s199 = scalar_select %p198, %s18, 1
      %p200 = scmp.lt.s32.totalorder %s197, 2
      %s201 = scalar_select %p200, %s197, 2
      %s202 = smul.addr %s199, 3
      %s203 = sadd.s32 %s201, %s202
      %s204 = smul.addr %s203, 8
      %s205 = scalar_lea.vmem %s3, %s204
      %s206 = smul.u32 3, %s19
      %p207 = scmp.lt.s32.totalorder %s18, 1
      %s208 = scalar_select %p207, %s18, 1
      %p209 = scmp.lt.s32.totalorder %s206, 2
      %s210 = scalar_select %p209, %s206, 2
      %s211 = smul.addr %s208, 3
      %s212 = sadd.s32 %s210, %s211
      %s213 = smul.addr %s212, 4
      %s214 = scalar_lea.vmem %s0, %s213
      %s215 = smul.u32 3, %s19
      %s216 = smul.u32 3, %s19
      %p217 = scmp.lt.s32.totalorder %s216, 2
      %s218 = scalar_select %p217, %s216, 2
      %s219 = smul.addr %s218, 8
      %s220 = scalar_lea.vmem %s2, %s219
      %s221 = smul.u32 3, %s19
      %s222 = smul.u32 3, %s19
      %p223 = scmp.lt.s32.totalorder %s18, 1
      %s224 = scalar_select %p223, %s18, 1
      %p225 = scmp.lt.s32.totalorder %s222, 2
      %s226 = scalar_select %p225, %s222, 2
      %s227 = smul.addr %s224, 3
      %s228 = sadd.s32 %s226, %s227
      %s229 = smul.addr %s228, 8
      %s230 = scalar_lea.vmem %s3, %s229
      %s231 = smul.u32 3, %s19
      %v233 = vld [vmem:[%s214] sm:$0xf]
      %v234 = vld [vmem:[%s214 + $0x4] sm:$0xf]
      %v235 = vld [vmem:[%s214 + $0x8] sm:$0x1]
      %v236 = vld [vmem:[%s1] sm:$0xf]
      %v237 = vld [vmem:[%s1 + $0x4] sm:$0xf]
      %v238 = vld [vmem:[%s1 + $0x8] sm:$0xf]
      %v239 = vld [vmem:[%s1 + $0xc] sm:$0xf]
      %v240 = vld [vmem:[%s1 + $0x10] sm:$0xf]
      %v241 = vld [vmem:[%s1 + $0x14] sm:$0xf]
      %v242 = vld [vmem:[%s1 + $0x18] sm:$0xf]
      %v243 = vld [vmem:[%s1 + $0x1c] sm:$0xf]
      %v244 = vld [vmem:[%s220] sm:$0xff]
      %v245 = vld [vmem:[%s220 + $0x8] sm:$0xff]
      %v246 = vld [vmem:[%s220 + $0x10] sm:$0x1]
      %v250 = vunpack.c.l.b16 %v233
      %v251 = vunpack.c.l.b16 %v234
      %v252 = vunpack.c.l.b16 %v235
      %v253 = vpack.c.b16 %v251, %v250
      %v254 = vpack.c.b16 %v252, %v252
      %v263 = vunpack.c.l.b16 %v236
      %v264 = vunpack.c.l.b16 %v237
      %v265 = vunpack.c.l.b16 %v238
      %v266 = vunpack.c.l.b16 %v239
      %v267 = vunpack.c.l.b16 %v240
      %v268 = vunpack.c.l.b16 %v241
      %v269 = vunpack.c.l.b16 %v242
      %v270 = vunpack.c.l.b16 %v243
      %v271 = vpack.c.b16 %v264, %v263
      %v272 = vpack.c.b16 %v266, %v265
      %v273 = vpack.c.b16 %v268, %v267
      %v274 = vpack.c.b16 %v270, %v269
      %vm279 = vcmask 523264
      %v281 = vsel %vm279, %v253, 0
      %v284 = vsel %vm279, %v254, 0
      %286 = vmatprep.subr.bf16.mxu0 0
      %287 = vmatpush1.bf16.msra.mxu0 %v271
      %288 = vmatprep.subr.bf16.mxu0 0
      %289 = vmatpush1.bf16.msra.mxu0 %v272
      %290 = vmatprep.subr.bf16.mxu0 0
      %291 = vmatpush1.bf16.msra.mxu0 %v273
      %292 = vmatprep.subr.bf16.mxu0 0
      %293 = vmatpush1.bf16.msra.mxu0 %v274
      %294 = vmatprep.subr.bf16.mxu0 0
      %295 = vmatpush1.bf16.msra.mxu0 0
      %296 = vmatprep.subr.bf16.mxu0 0
      %297 = vmatpush1.bf16.msra.mxu0 0
      %298 = vmatprep.subr.bf16.mxu0 0
      %299 = vmatpush1.bf16.msra.mxu0 0
      %300 = vmatprep.subr.bf16.mxu0 0
      %301 = vmatpush1.bf16.msra.mxu0 0
      %302 = vmatprep.subr.bf16.mxu0 0
      %303 = vmatpush1.bf16.msra.mxu0 0
      %304 = vmatprep.subr.bf16.mxu0 0
      %305 = vmatpush1.bf16.msra.mxu0 0
      %306 = vmatprep.subr.bf16.mxu0 0
      %307 = vmatpush1.bf16.msra.mxu0 0
      %308 = vmatprep.subr.bf16.mxu0 0
      %309 = vmatpush1.bf16.msra.mxu0 0
      %310 = vmatprep.subr.bf16.mxu0 0
      %311 = vmatpush1.bf16.msra.mxu0 0
      %312 = vmatprep.subr.bf16.mxu0 0
      %313 = vmatpush1.bf16.msra.mxu0 0
      %314 = vmatprep.subr.bf16.mxu0 0
      %315 = vmatpush1.bf16.msra.mxu0 0
      %316 = vmatprep.subr.bf16.mxu0 0
      %317 = vmatpush1.bf16.msra.mxu0 0
      %318 = vmatprep.mubr.bf16.mxu0 0
      %319 = vmatmul.mubr.bf16.gmra.mrb[0].mxu0 %v281
      %v320 = vpop.f32.mrb[0].mxu0
      %v321 = vadd.f32 %v244, %v320
      %v322 = vpop.f32.mrb[0].mxu0
      %v323 = vpop.f32.mrb[0].mxu0
      %v324 = vadd.f32 %v245, %v323
      %v325 = vpop.f32.mrb[0].mxu0
      %326 = vmatprep.mubr.bf16.mxu0 0
      %327 = vmatmul.mubr.bf16.gmra.mrb[0].mxu0 %v284
      %v328 = vpop.f32.mrb[0].mxu0
      %v329 = vadd.f32 %v246, %v328
      %v330 = vpop.f32.mrb[0].mxu0
      %v331 = vpop.f32.mrb[0].mxu0
      %v332 = vpop.f32.mrb[0].mxu0
      %333 = vdwg.mxu0
      %vm334 = vcmask 261120
      %335 = vst.msk [vmem:[%s230] sm:$0xff] %vm334, %v321
      %336 = vst.msk [vmem:[%s230 + $0x8] sm:$0xff] %vm334, %v324
      %vm337 = vcmask 253952
      %338 = vst.msk [vmem:[%s230 + $0x10] sm:$0x1] %vm337, %v329
      %s339 = smul.u32 3, %s19
      %p340 = scmp.lt.s32.totalorder %s18, 1
      %s341 = scalar_select %p340, %s18, 1
      %p342 = scmp.lt.s32.totalorder %s339, 2
      %s343 = scalar_select %p342, %s339, 2
      %s344 = smul.addr %s341, 3
      %s345 = sadd.s32 %s343, %s344
      %s346 = smul.addr %s345, 8
      %s347 = scalar_lea.vmem %s3, %s346
      // Predicated region
      $region33: #{tpu_custom_call.1} parent=31 // pred_check
        %p348 = pneg %p121
      $region34: #{tpu_custom_call.1} parent=31 // pred_check_branch
        %350 = sbr.rel (%p348) target = $region36
      $region35: #{tpu_custom_call.1} parent=31 // pred_region
        %s351 = smul.u32 3, %s19
      $region36: #{tpu_custom_call.1} parent=31 // pred_fallthru
        _
    $region32: #{tpu_custom_call.1} parent=5 // pred_fallthru
      _
    %p352 = scmp.le.s32.totalorder 2, %s9
    // Predicated region
    $region37: #{tpu_custom_call.1} parent=5 // pred_check
      %p353 = pneg %p352
    $region38: #{tpu_custom_call.1} parent=5 // pred_check_branch
      %355 = sbr.rel (%p353) target = $region40
    $region39: #{tpu_custom_call.1} parent=5 // pred_region
      %s356 = ssub.s32 %s9, 2
      // Predicated region
      $region41: #{tpu_custom_call.1} parent=39 // pred_check
        %p357 = pneg %p127
      $region42: #{tpu_custom_call.1} parent=39 // pred_check_branch
        %359 = sbr.rel (%p357) target = $region44
      $region43: #{tpu_custom_call.1} parent=39 // pred_region
        %s360 = smul.u32 3, %s21
        %p361 = scmp.lt.s32.totalorder %s20, 1
        %s362 = scalar_select %p361, %s20, 1
        %p363 = scmp.lt.s32.totalorder %s360, 2
        %s364 = scalar_select %p363, %s360, 2
        %s365 = smul.addr %s362, 3
        %s366 = sadd.s32 %s364, %s365
        %s367 = smul.addr %s366, 8
        %s368 = scalar_lea.vmem %s3, %s367
      $region44: #{tpu_custom_call.1} parent=39 // pred_fallthru
        _
    $region40: #{tpu_custom_call.1} parent=5 // pred_fallthru
      _
  $region6: #{tpu_custom_call.1} parent=0 // loop_footer
    %s13 = sadd.s32 1, %s9
  $region7: #{tpu_custom_call.1} parent=0 // loop_footer_branch
    %8 = sbr.rel target = $region3
  $region8: #{tpu_custom_call.1} parent=0 // loop_exit
    _

</llo_original>
